<compile_context>
chip_gen: v5e
topology: v5e:2x2
jax: 0.10.0
libtpu: 0.0.40
codegen_flags: <defaults>
</compile_context>

<pallas_src>
import jax
import jax.numpy as jnp
from jax.experimental import pallas as pl
from jax.experimental.pallas import tpu as pltpu

B = 2            # batch
S = 8            # sequence length
H = 32           # hidden_size
NUM_LABELS = 2   # config.num_labels
LANES = 128      # pad the logits slab to full lane width for unmasked stores


def classification_head_kernel(cls_ref, wd_ref, bd_ref, wp_ref, bp_ref, out_ref):
    """Fused dense -> tanh -> out_proj on the CLS features, all in VMEM."""
    x = cls_ref[...].astype(jnp.float32)                               # (B, H)
    # dropout(p=0.1) is identity in eval/inference mode.
    h = jnp.tanh(
        jnp.dot(x, wd_ref[...], preferred_element_type=jnp.float32) + bd_ref[...])
    logits = (jnp.dot(h, wp_ref[...], preferred_element_type=jnp.float32)
              + bp_ref[...])                                           # (B, LANES)
    out_ref[...] = logits.astype(out_ref.dtype)


def classification_head(features, params):
    """features: (B, S, H) -> logits (B, NUM_LABELS). Single fused kernel launch."""
    # features[:, 0, :] — CLS token slice done in the wrapper (tiny, guaranteed
    # layout); the kernel then only touches the (B, H) CLS activations.
    # TODO(synk): fold this gather into a fused encoder+head kernel (BlockSpec /
    # Element index_map) once the real HF encoder stack is written in Pallas.
    cls = features[:, 0, :]

    # Zero-pad out_proj weight/bias from NUM_LABELS to a full 128-lane slab so
    # the kernel's output store is lane-dense (unmasked vst).
    wp = jnp.pad(params["wp"], ((0, 0), (0, LANES - NUM_LABELS)))
    bp = jnp.pad(params["bp"], ((0, 0), (0, LANES - NUM_LABELS)))

    vmem = pl.BlockSpec(memory_space=pltpu.MemorySpace.VMEM)
    out_padded = pl.pallas_call(
        classification_head_kernel,
        out_shape=jax.ShapeDtypeStruct((features.shape[0], LANES), jnp.float32),
        in_specs=[vmem] * 5,
        out_specs=vmem,
    )(cls, params["wd"], params["bd"], wp, bp)
    return out_padded[:, :NUM_LABELS]


def make_params(key):
    kd, kdb, kp, kpb = jax.random.split(key, 4)
    n = lambda k, shape, s=0.02: (s * jax.random.normal(k, shape)).astype(jnp.float32)
    return {
        # dense: Linear(H, H); stored (in, out) = torch weight transposed
        "wd": n(kd, (H, H)),
        "bd": n(kdb, (1, H)),
        # out_proj: Linear(H, NUM_LABELS)
        "wp": n(kp, (H, NUM_LABELS)),
        "bp": n(kpb, (1, NUM_LABELS)),
    }


def reference_head(features, params):
    """Pure-JAX reference of ClassificationHead.forward (eval mode)."""
    x = features[:, 0, :]
    x = jnp.tanh(x @ params["wd"] + params["bd"])
    return x @ params["wp"] + params["bp"]


if __name__ == "__main__":
    key = jax.random.PRNGKey(0)
    k_x, k_p = jax.random.split(key)
    # `features` = encoder last_hidden_state: (batch, seq, hidden)
    features = jax.random.normal(k_x, (B, S, H), dtype=jnp.float32)
    params = make_params(k_p)

    fwd = jax.jit(classification_head)
    logits = fwd(features, params)
    jax.block_until_ready(logits)

    assert logits.shape == (B, NUM_LABELS)
    assert bool(jnp.all(jnp.isfinite(logits)))
    ref = reference_head(features, params)
    assert bool(jnp.allclose(logits, ref, atol=1e-5, rtol=1e-5))
    print("KERNEL_OK")
</pallas_src>

<mosaic_0001>
module attributes {stable_mosaic.version = 11 : i64} {
  func.func @classification_head_kernel(%arg0: memref<2x32xf32, #tpu.memory_space<vmem>>, %arg1: memref<32x32xf32, #tpu.memory_space<vmem>>, %arg2: memref<1x32xf32, #tpu.memory_space<vmem>>, %arg3: memref<32x128xf32, #tpu.memory_space<vmem>>, %arg4: memref<1x128xf32, #tpu.memory_space<vmem>>, %arg5: memref<2x128xf32, #tpu.memory_space<vmem>>) attributes {dimension_semantics = [], scalar_prefetch = 0 : i64, scratch_operands = 0 : i64, tpu.core_type = #tpu.core_type<tc>} {
    %c0 = arith.constant 0 : index
    %c0_0 = arith.constant 0 : index
    %0 = vector.load %arg0[%c0, %c0_0] : memref<2x32xf32, #tpu.memory_space<vmem>>, vector<2x32xf32>
    %c0_1 = arith.constant 0 : index
    %c0_2 = arith.constant 0 : index
    %1 = vector.load %arg1[%c0_1, %c0_2] : memref<32x32xf32, #tpu.memory_space<vmem>>, vector<32x32xf32>
    %cst = arith.constant dense<0.000000e+00> : vector<2x32xf32>
    %2 = tpu.matmul %0, %1, %cst {dimension_numbers = #tpu.dot_dimension_numbers<[1], [0], [0], [1], [0, 0, 1, 1], [], []>} : vector<2x32xf32>, vector<32x32xf32>, vector<2x32xf32> -> vector<2x32xf32>
    %c0_3 = arith.constant 0 : index
    %c0_4 = arith.constant 0 : index
    %3 = vector.load %arg2[%c0_3, %c0_4] : memref<1x32xf32, #tpu.memory_space<vmem>>, vector<1x32xf32>
    %4 = vector.broadcast %3 : vector<1x32xf32> to vector<2x32xf32>
    %5 = arith.addf %2, %4 : vector<2x32xf32>
    %6 = math.tanh %5 : vector<2x32xf32>
    %c0_5 = arith.constant 0 : index
    %c0_6 = arith.constant 0 : index
    %7 = vector.load %arg3[%c0_5, %c0_6] : memref<32x128xf32, #tpu.memory_space<vmem>>, vector<32x128xf32>
    %cst_7 = arith.constant dense<0.000000e+00> : vector<2x128xf32>
    %8 = tpu.matmul %6, %7, %cst_7 {dimension_numbers = #tpu.dot_dimension_numbers<[1], [0], [0], [1], [0, 0, 1, 1], [], []>} : vector<2x32xf32>, vector<32x128xf32>, vector<2x128xf32> -> vector<2x128xf32>
    %c0_8 = arith.constant 0 : index
    %c0_9 = arith.constant 0 : index
    %9 = vector.load %arg4[%c0_8, %c0_9] : memref<1x128xf32, #tpu.memory_space<vmem>>, vector<1x128xf32>
    %10 = vector.broadcast %9 : vector<1x128xf32> to vector<2x128xf32>
    %11 = arith.addf %8, %10 : vector<2x128xf32>
    %c0_10 = arith.constant 0 : index
    %c0_11 = arith.constant 0 : index
    %12 = vector.load %arg5[%c0_10, %c0_11] : memref<2x128xf32, #tpu.memory_space<vmem>>, vector<2x128xf32>
    tpu.vector_store %arg5[%c0_10, %c0_11], %11 {strides = array<i32>} : memref<2x128xf32, #tpu.memory_space<vmem>>, vector<2x128xf32>,
    return
  }
}

</mosaic_0001>

<llo_original>
// kernel: classification_head.1
$region0: #{classification_head.1}
  #allocation0 [shape = 'u32[]', space=smem, size = 0x4, offset = 0x4, fixed_abs, tag = 'smem constant byte address 0x4 - core index']
  #allocation1 [shape = 'u32[72,128]{1,0:T(1,128)}', space=vmem, size = 0x9000, scoped, tag = 'internal scratch']
  %s0 = inlined_call_operand.vmem [shape: f32[2,32], index: 0, kind: input, shape index: {}]
  %s1 = inlined_call_operand.vmem [shape: f32[32,32], index: 1, kind: input, shape index: {}]
  %s2 = inlined_call_operand.vmem [shape: f32[1,32], index: 2, kind: input, shape index: {}]
  %s3 = inlined_call_operand.vmem [shape: f32[32,128], index: 3, kind: input, shape index: {}]
  %s4 = inlined_call_operand.vmem [shape: f32[1,128], index: 4, kind: input, shape index: {}]
  %s5 = inlined_call_operand.hbm [shape: f32[2,128], index: 5, kind: output, shape index: {}]
  %s6 = sld [smem:[#allocation0]]
  $region30: #{classification_head.1} parent=0
    _
  %s8 = ssub.s32 1, %s6
  %s9 = scalar_select 0, %s8, %s6
  $region1: #{classification_head.1} parent=0
    #allocation2 [shape = 'u8[1024]{0}', space=vmem, size = 0x400, scoped, tag = 'output window, operand 0, single buffered']
    #allocation3 [shape = 's32[1]{0}', space=sflag, size = 0x4, scoped, tag = 'scoped memory for classification_head.1']
    %10 = vsyncpa [#allocation3], 0
    // Predicated region
    $region2: #{classification_head.1} parent=1 // pred_check
      _
    $region3: #{classification_head.1} parent=1 // pred_check_branch
      %12 = sbr.rel (0) target = $region5
    $region4: #{classification_head.1} parent=1 // pred_region
      _
    $region5: #{classification_head.1} parent=1 // pred_fallthru
      _
    // Predicated region
    $region6: #{classification_head.1} parent=1 // pred_check
      _
    $region7: #{classification_head.1} parent=1 // pred_check_branch
      %14 = sbr.rel (0) target = $region9
    $region8: #{classification_head.1} parent=1 // pred_region
      _
    $region9: #{classification_head.1} parent=1 // pred_fallthru
      _
    // Predicated region
    $region10: #{classification_head.1} parent=1 // pred_check
      _
    $region11: #{classification_head.1} parent=1 // pred_check_branch
      %16 = sbr.rel (0) target = $region13
    $region12: #{classification_head.1} parent=1 // pred_region
      _
    $region13: #{classification_head.1} parent=1 // pred_fallthru
      _
    // Predicated region
    $region14: #{classification_head.1} parent=1 // pred_check
      _
    $region15: #{classification_head.1} parent=1 // pred_check_branch
      %18 = sbr.rel (0) target = $region17
    $region16: #{classification_head.1} parent=1 // pred_region
      _
    $region17: #{classification_head.1} parent=1 // pred_fallthru
      _
    // Predicated region
    $region18: #{classification_head.1} parent=1 // pred_check
      _
    $region19: #{classification_head.1} parent=1 // pred_check_branch
      %20 = sbr.rel (0) target = $region21
    $region20: #{classification_head.1} parent=1 // pred_region
      _
    $region21: #{classification_head.1} parent=1 // pred_fallthru
      _
    %v21 = vld [vmem:[%s0] sm:$0x3]
    %v22 = vld [vmem:[%s1] sm:$0xff]
    %v23 = vld [vmem:[%s1 + $0x8] sm:$0xff]
    %v24 = vld [vmem:[%s1 + $0x10] sm:$0xff]
    %v25 = vld [vmem:[%s1 + $0x18] sm:$0xff]
    %v26 = vld [vmem:[%s2] sm:$0x1]
    %v28 = vperm.slane %v26, 0
    %vm30 = vcmask 261120
    %v32 = vsel %vm30, %v21, 0
    %34 = vmatpush.msra.mxu0 0.0
    %35 = vmatpush.msra.mxu0 0.0
    %36 = vmatpush.msra.mxu0 0.0
    %37 = vmatpush.msra.mxu0 0.0
    %38 = vmatpush.msra.mxu0 0.0
    %39 = vmatpush.msra.mxu0 0.0
    %40 = vmatpush.msra.mxu0 0.0
    %41 = vmatpush.msra.mxu0 0.0
    %42 = vmatpush.msra.mxu0 0.0
    %43 = vmatpush.msra.mxu0 0.0
    %44 = vmatpush.msra.mxu0 0.0
    %45 = vmatpush.msra.mxu0 0.0
    %46 = vmatpush.msra.mxu0 %v25
    %47 = vmatpush.msra.mxu0 %v24
    %48 = vmatpush.msra.mxu0 %v23
    %49 = vmatpush.msra.mxu0 %v22
    %50 = vmatmul.f32.gmra.mxu0 %v32
    %v51 = vpop.f32.mrf.mxu0
    %v52 = vadd.f32 %v28, %v51
    %53 = vdwg.mxu0
    %v54 = vtanh.pop %v52
    %v55 = vld [vmem:[%s3] sm:$0xff]
    %v56 = vld [vmem:[%s3 + $0x8] sm:$0xff]
    %v57 = vld [vmem:[%s3 + $0x10] sm:$0xff]
    %v58 = vld [vmem:[%s3 + $0x18] sm:$0xff]
    %v59 = vld [vmem:[%s4] sm:$0x1]
    %v61 = vperm.slane %v59, 0
    %v64 = vsel %vm30, %v54, 0
    %66 = vmatpush.msra.mxu0 0.0
    %67 = vmatpush.msra.mxu0 0.0
    %68 = vmatpush.msra.mxu0 0.0
    %69 = vmatpush.msra.mxu0 0.0
    %70 = vmatpush.msra.mxu0 0.0
    %71 = vmatpush.msra.mxu0 0.0
    %72 = vmatpush.msra.mxu0 0.0
    %73 = vmatpush.msra.mxu0 0.0
    %74 = vmatpush.msra.mxu0 0.0
    %75 = vmatpush.msra.mxu0 0.0
    %76 = vmatpush.msra.mxu0 0.0
    %77 = vmatpush.msra.mxu0 0.0
    %78 = vmatpush.msra.mxu0 %v58
    %79 = vmatpush.msra.mxu0 %v57
    %80 = vmatpush.msra.mxu0 %v56
    %81 = vmatpush.msra.mxu0 %v55
    %82 = vmatmul.f32.gmra.mxu0 %v64
    %v83 = vpop.f32.mrf.mxu0
    %v84 = vadd.f32 %v61, %v83
    %85 = vdwg.mxu0
    %86 = vst [vmem:[#allocation2] sm:$0x3] %v84
    // Predicated region
    $region22: #{classification_head.1} parent=1 // pred_check
      _
    $region23: #{classification_head.1} parent=1 // pred_check_branch
      %88 = sbr.rel (0) target = $region25
    $region24: #{classification_head.1} parent=1 // pred_region
      %90 = vsyncadd [#allocation3], 0
      %s92 = sshll.u32 [#allocation2], 4
      %s93 = int_to_ptr.vmem [resolvable:$true] %s92
      %s94 = sshll.u32 %s5, 4
      %s95 = int_to_ptr.hbm [resolvable:$true] %s94
      %97 = dma.vmem_to_hbm [thread:$0]  %s93, 32, %s95, [#allocation3]
    $region25: #{classification_head.1} parent=1 // pred_fallthru
      _
    // Predicated region
    $region26: #{classification_head.1} parent=1 // pred_check
      _
    $region27: #{classification_head.1} parent=1 // pred_check_branch
      %99 = sbr.rel (0) target = $region29
    $region28: #{classification_head.1} parent=1 // pred_region
      %101 = dma.done [#allocation3], 32
    $region29: #{classification_head.1} parent=1 // pred_fallthru
      _
    %102 = vsyncpa [#allocation3], 1

</llo_original>
